<compile_context>
chip_gen: v7x
topology: tpu7x:2x2x1
jax: 0.10.0
libtpu: 0.0.40
codegen_flags: <defaults>
</compile_context>

<pallas_src>
import functools

import jax
import jax.numpy as jnp
from jax.experimental import pallas as pl
from jax.experimental.pallas import tpu as pltpu


def _round_up(x, m):
    return ((x + m - 1) // m) * m


def _infonce_kernel(a_ref, s_ref, pos_ref, neg_ref, out_ref,
                    acc_num, acc_den, acc_cnt, *, inv_tau):
    k = pl.program_id(1)

    @pl.when(k == 0)
    def _():
        acc_num[...] = jnp.zeros_like(acc_num)
        acc_den[...] = jnp.zeros_like(acc_den)
        acc_cnt[...] = jnp.zeros_like(acc_cnt)

    a = a_ref[...].astype(jnp.float32)          # (TN, D)  resident across k
    s = s_ref[...].astype(jnp.float32)          # (TM, D)  streamed per k

    # F.normalize(x, dim=1, eps=1e-12): x / max(||x||, eps)
    #   == x * rsqrt(max(sum(x^2), eps^2))   (rsqrt -> EUP, no VPU divide)
    a_scale = jax.lax.rsqrt(
        jnp.maximum(jnp.sum(a * a, axis=-1, keepdims=True), 1e-24))
    s_scale = jax.lax.rsqrt(
        jnp.maximum(jnp.sum(s * s, axis=-1, keepdims=True), 1e-24))
    a = a * (a_scale * inv_tau)   # fold 1/tau into the (TN, D) scaling
    s = s * s_scale

    # sim = (h1 @ h2.T) / tau without materializing s.T: contract last dims.
    sim = jax.lax.dot_general(
        a, s, dimension_numbers=(((1,), (1,)), ((), ())),
        preferred_element_type=jnp.float32)     # (TN, TM)

    pos = pos_ref[...].astype(jnp.float32)
    neg = neg_ref[...].astype(jnp.float32)

    # Online accumulation of the row reductions (no (TN,TM) log_prob temp).
    acc_den[...] += jnp.sum(jnp.exp(sim) * (pos + neg), axis=1, keepdims=True)
    acc_num[...] += jnp.sum(sim * pos, axis=1, keepdims=True)
    acc_cnt[...] += jnp.sum(pos, axis=1, keepdims=True)

    @pl.when(k == pl.num_programs(1) - 1)
    def _():
        # loss_row = sum(sim*pos)/sum(pos) - log(denom); return -loss_row
        out_ref[...] = -(acc_num[...] / acc_cnt[...] - jnp.log(acc_den[...]))


def info_nce(anchor, sample, pos_mask, neg_mask, tau, *, tn=None, tm=None):
    """Pallas InfoNCE. anchor (N,D), sample (M,D), masks (N,M) -> (N,) loss."""
    N, D = anchor.shape
    M, D2 = sample.shape
    assert D == D2 and pos_mask.shape == (N, M) and neg_mask.shape == (N, M)

    # Tile sizes: sized so fp32 mask tiles (2 x TN x TM x 4 B, double-buffered)
    # plus anchor/sample tiles stay well under v5e's 16 MiB scoped default and
    # far under v7x's 64 MiB physical VMEM.
    if tn is None:
        tn = min(256, _round_up(N, 8))
    if tm is None:
        tm = min(1024, _round_up(M, 128))

    n_pad = _round_up(N, tn)
    m_pad = _round_up(M, tm)

    f32 = jnp.float32
    anchor_p = jnp.pad(anchor.astype(f32), ((0, n_pad - N), (0, 0)))
    sample_p = jnp.pad(sample.astype(f32), ((0, m_pad - M), (0, 0)))
    pos_p = jnp.pad(pos_mask.astype(f32), ((0, n_pad - N), (0, m_pad - M)))
    neg_p = jnp.pad(neg_mask.astype(f32), ((0, n_pad - N), (0, m_pad - M)))

    grid = (n_pad // tn, m_pad // tm)
    kernel = functools.partial(_infonce_kernel, inv_tau=1.0 / float(tau))

    out = pl.pallas_call(
        kernel,
        out_shape=jax.ShapeDtypeStruct((n_pad, 1), jnp.float32),
        grid_spec=pltpu.PrefetchScalarGridSpec(
            num_scalar_prefetch=0,
            grid=grid,
            in_specs=[
                # anchor row-tile resident across the M (k) axis
                pl.BlockSpec((tn, D), lambda i, k: (i, 0)),
                # sample / mask tiles streamed along k (double-buffered DMA)
                pl.BlockSpec((tm, D), lambda i, k: (k, 0)),
                pl.BlockSpec((tn, tm), lambda i, k: (i, k)),
                pl.BlockSpec((tn, tm), lambda i, k: (i, k)),
            ],
            # output block constant across k -> accumulator-style residency
            out_specs=pl.BlockSpec((tn, 1), lambda i, k: (i, 0)),
            scratch_shapes=[pltpu.VMEM((tn, 1), jnp.float32)] * 3,
        ),
        compiler_params=pltpu.CompilerParams(
            dimension_semantics=("parallel", "arbitrary"),
            vmem_limit_bytes=32 * 1024 * 1024,
        ),
    )(anchor_p, sample_p, pos_p, neg_p)

    return out[:N, 0]   # drop padded rows, squeeze to (N,)


def _reference(anchor, sample, pos_mask, neg_mask, tau):
    a = anchor / jnp.maximum(
        jnp.linalg.norm(anchor, axis=1, keepdims=True), 1e-12)
    s = sample / jnp.maximum(
        jnp.linalg.norm(sample, axis=1, keepdims=True), 1e-12)
    sim = (a @ s.T) / tau
    exp_sim = jnp.exp(sim) * (pos_mask + neg_mask)
    log_prob = sim - jnp.log(exp_sim.sum(axis=1, keepdims=True))
    loss = (log_prob * pos_mask).sum(axis=1) / pos_mask.sum(axis=1)
    return -loss


if __name__ == "__main__":
    key = jax.random.PRNGKey(0)

    # --- case 1: small, matches the module's typical usage (N == M) --------
    tau = 0.5
    N, M, D = 8, 8, 32
    k1, k2, key = jax.random.split(key, 3)
    anchor = jax.random.normal(k1, (N, D), dtype=jnp.float32)
    sample = jax.random.normal(k2, (M, D), dtype=jnp.float32)
    pos_mask = jnp.eye(N, M, dtype=jnp.float32)
    neg_mask = 1.0 - pos_mask

    out = info_nce(anchor, sample, pos_mask, neg_mask, tau)
    jax.block_until_ready(out)
    ref = _reference(anchor, sample, pos_mask, neg_mask, tau)
    assert out.shape == (N,)
    assert jnp.allclose(out, ref, atol=1e-4, rtol=1e-4), (out, ref)

    # --- case 2: forces a multi-tile grid (2 row tiles x 2 reduction steps) -
    tau2 = 0.2
    N2, M2, D2 = 16, 256, 32
    k3, k4, k5, key = jax.random.split(key, 4)
    anchor2 = jax.random.normal(k3, (N2, D2), dtype=jnp.float32)
    sample2 = jax.random.normal(k4, (M2, D2), dtype=jnp.float32)
    pos2 = jax.random.bernoulli(k5, 0.1, (N2, M2)).astype(jnp.float32)
    # guarantee at least one positive per row (avoid 0/0, same as reference)
    pos2 = pos2.at[jnp.arange(N2), jnp.arange(N2) % M2].set(1.0)
    neg2 = 1.0 - pos2

    out2 = info_nce(anchor2, sample2, pos2, neg2, tau2, tn=8, tm=128)
    jax.block_until_ready(out2)
    ref2 = _reference(anchor2, sample2, pos2, neg2, tau2)
    assert out2.shape == (N2,)
    assert jnp.allclose(out2, ref2, atol=1e-4, rtol=1e-4), (out2, ref2)

    print("KERNEL_OK")
</pallas_src>

<mosaic_0001>
module attributes {stable_mosaic.version = 11 : i64} {
  func.func @_infonce_kernel(%arg0: i32, %arg1: i32, %arg2: memref<8x32xf32, #tpu.memory_space<vmem>>, %arg3: memref<128x32xf32, #tpu.memory_space<vmem>>, %arg4: memref<8x128xf32, #tpu.memory_space<vmem>>, %arg5: memref<8x128xf32, #tpu.memory_space<vmem>>, %arg6: memref<8x1xf32, #tpu.memory_space<vmem>>, %arg7: memref<8x1xf32, #tpu.memory_space<vmem>>, %arg8: memref<8x1xf32, #tpu.memory_space<vmem>>, %arg9: memref<8x1xf32, #tpu.memory_space<vmem>>) attributes {dimension_semantics = [#tpu.dimension_semantics<parallel>, #tpu.dimension_semantics<arbitrary>], iteration_bounds = array<i64: 1, 1>, scalar_prefetch = 0 : i64, scratch_operands = 3 : i64, tpu.core_type = #tpu.core_type<tc>, window_params = [{transform_indices = @transform_0, window_bounds = array<i64: 8, 32>}, {transform_indices = @transform_1, window_bounds = array<i64: 128, 32>}, {transform_indices = @transform_2, window_bounds = array<i64: 8, 128>}, {transform_indices = @transform_3, window_bounds = array<i64: 8, 128>}, {transform_indices = @transform_4, window_bounds = array<i64: 8, 1>}]} {
    %c0_i32 = arith.constant 0 : i32
    %0 = arith.cmpi eq, %arg1, %c0_i32 : i32
    %1 = arith.extui %0 : i1 to i32
    %c0_i32_0 = arith.constant 0 : i32
    %2 = arith.cmpi ne, %1, %c0_i32_0 : i32
    scf.if %2 {
      %cst_30 = arith.constant 0.000000e+00 : f32
      %48 = vector.broadcast %cst_30 : f32 to vector<8x1xf32>
      %c0_31 = arith.constant 0 : index
      %c0_32 = arith.constant 0 : index
      %49 = vector.load %arg7[%c0_31, %c0_32] : memref<8x1xf32, #tpu.memory_space<vmem>>, vector<8x1xf32>
      tpu.vector_store %arg7[%c0_31, %c0_32], %48 {strides = array<i32>} : memref<8x1xf32, #tpu.memory_space<vmem>>, vector<8x1xf32>,
      %cst_33 = arith.constant 0.000000e+00 : f32
      %50 = vector.broadcast %cst_33 : f32 to vector<8x1xf32>
      %c0_34 = arith.constant 0 : index
      %c0_35 = arith.constant 0 : index
      %51 = vector.load %arg8[%c0_34, %c0_35] : memref<8x1xf32, #tpu.memory_space<vmem>>, vector<8x1xf32>
      tpu.vector_store %arg8[%c0_34, %c0_35], %50 {strides = array<i32>} : memref<8x1xf32, #tpu.memory_space<vmem>>, vector<8x1xf32>,
      %cst_36 = arith.constant 0.000000e+00 : f32
      %52 = vector.broadcast %cst_36 : f32 to vector<8x1xf32>
      %c0_37 = arith.constant 0 : index
      %c0_38 = arith.constant 0 : index
      %53 = vector.load %arg9[%c0_37, %c0_38] : memref<8x1xf32, #tpu.memory_space<vmem>>, vector<8x1xf32>
      tpu.vector_store %arg9[%c0_37, %c0_38], %52 {strides = array<i32>} : memref<8x1xf32, #tpu.memory_space<vmem>>, vector<8x1xf32>,
    } else {
    }
    %c0 = arith.constant 0 : index
    %c0_1 = arith.constant 0 : index
    %3 = vector.load %arg2[%c0, %c0_1] : memref<8x32xf32, #tpu.memory_space<vmem>>, vector<8x32xf32>
    %c0_2 = arith.constant 0 : index
    %c0_3 = arith.constant 0 : index
    %4 = vector.load %arg3[%c0_2, %c0_3] : memref<128x32xf32, #tpu.memory_space<vmem>>, vector<128x32xf32>
    %5 = arith.mulf %3, %3 : vector<8x32xf32>
    %cst = arith.constant dense<0.000000e+00> : vector<8xf32>
    %6 = vector.multi_reduction <add>, %5, %cst [1] : vector<8x32xf32> to vector<8xf32>
    %7 = vector.shape_cast %6 : vector<8xf32> to vector<8x1xf32>
    %cst_4 = arith.constant 1.000000e-24 : f32
    %8 = vector.broadcast %cst_4 : f32 to vector<8x1xf32>
    %9 = arith.maximumf %7, %8 : vector<8x1xf32>
    %10 = math.rsqrt %9 : vector<8x1xf32>
    %11 = arith.mulf %4, %4 : vector<128x32xf32>
    %cst_5 = arith.constant dense<0.000000e+00> : vector<128xf32>
    %12 = vector.multi_reduction <add>, %11, %cst_5 [1] : vector<128x32xf32> to vector<128xf32>
    %13 = vector.shape_cast %12 : vector<128xf32> to vector<128x1xf32>
    %cst_6 = arith.constant 1.000000e-24 : f32
    %14 = vector.broadcast %cst_6 : f32 to vector<128x1xf32>
    %15 = arith.maximumf %13, %14 : vector<128x1xf32>
    %16 = math.rsqrt %15 : vector<128x1xf32>
    %cst_7 = arith.constant 2.000000e+00 : f32
    %17 = vector.broadcast %cst_7 : f32 to vector<8x1xf32>
    %18 = arith.mulf %10, %17 : vector<8x1xf32>
    %19 = vector.broadcast %18 : vector<8x1xf32> to vector<8x32xf32>
    %20 = arith.mulf %3, %19 : vector<8x32xf32>
    %21 = vector.broadcast %16 : vector<128x1xf32> to vector<128x32xf32>
    %22 = arith.mulf %4, %21 : vector<128x32xf32>
    %cst_8 = arith.constant dense<0.000000e+00> : vector<8x128xf32>
    %23 = tpu.matmul %20, %22, %cst_8 {dimension_numbers = #tpu.dot_dimension_numbers<[1], [1], [0], [0], [0, 0, 1, 0], [], []>} : vector<8x32xf32>, vector<128x32xf32>, vector<8x128xf32> -> vector<8x128xf32>
    %c0_9 = arith.constant 0 : index
    %c0_10 = arith.constant 0 : index
    %24 = vector.load %arg4[%c0_9, %c0_10] : memref<8x128xf32, #tpu.memory_space<vmem>>, vector<8x128xf32>
    %c0_11 = arith.constant 0 : index
    %c0_12 = arith.constant 0 : index
    %25 = vector.load %arg5[%c0_11, %c0_12] : memref<8x128xf32, #tpu.memory_space<vmem>>, vector<8x128xf32>
    %c0_13 = arith.constant 0 : index
    %c0_14 = arith.constant 0 : index
    %26 = vector.load %arg8[%c0_13, %c0_14] : memref<8x1xf32, #tpu.memory_space<vmem>>, vector<8x1xf32>
    %27 = math.exp %23 : vector<8x128xf32>
    %28 = arith.addf %24, %25 : vector<8x128xf32>
    %29 = arith.mulf %27, %28 : vector<8x128xf32>
    %cst_15 = arith.constant dense<0.000000e+00> : vector<8xf32>
    %30 = vector.multi_reduction <add>, %29, %cst_15 [1] : vector<8x128xf32> to vector<8xf32>
    %31 = vector.shape_cast %30 : vector<8xf32> to vector<8x1xf32>
    %32 = arith.addf %26, %31 : vector<8x1xf32>
    %c0_16 = arith.constant 0 : index
    %c0_17 = arith.constant 0 : index
    %33 = vector.load %arg8[%c0_16, %c0_17] : memref<8x1xf32, #tpu.memory_space<vmem>>, vector<8x1xf32>
    tpu.vector_store %arg8[%c0_16, %c0_17], %32 {strides = array<i32>} : memref<8x1xf32, #tpu.memory_space<vmem>>, vector<8x1xf32>,
    %c0_18 = arith.constant 0 : index
    %c0_19 = arith.constant 0 : index
    %34 = vector.load %arg7[%c0_18, %c0_19] : memref<8x1xf32, #tpu.memory_space<vmem>>, vector<8x1xf32>
    %35 = arith.mulf %23, %24 : vector<8x128xf32>
    %cst_20 = arith.constant dense<0.000000e+00> : vector<8xf32>
    %36 = vector.multi_reduction <add>, %35, %cst_20 [1] : vector<8x128xf32> to vector<8xf32>
    %37 = vector.shape_cast %36 : vector<8xf32> to vector<8x1xf32>
    %38 = arith.addf %34, %37 : vector<8x1xf32>
    %c0_21 = arith.constant 0 : index
    %c0_22 = arith.constant 0 : index
    %39 = vector.load %arg7[%c0_21, %c0_22] : memref<8x1xf32, #tpu.memory_space<vmem>>, vector<8x1xf32>
    tpu.vector_store %arg7[%c0_21, %c0_22], %38 {strides = array<i32>} : memref<8x1xf32, #tpu.memory_space<vmem>>, vector<8x1xf32>,
    %c0_23 = arith.constant 0 : index
    %c0_24 = arith.constant 0 : index
    %40 = vector.load %arg9[%c0_23, %c0_24] : memref<8x1xf32, #tpu.memory_space<vmem>>, vector<8x1xf32>
    %cst_25 = arith.constant dense<0.000000e+00> : vector<8xf32>
    %41 = vector.multi_reduction <add>, %24, %cst_25 [1] : vector<8x128xf32> to vector<8xf32>
    %42 = vector.shape_cast %41 : vector<8xf32> to vector<8x1xf32>
    %43 = arith.addf %40, %42 : vector<8x1xf32>
    %c0_26 = arith.constant 0 : index
    %c0_27 = arith.constant 0 : index
    %44 = vector.load %arg9[%c0_26, %c0_27] : memref<8x1xf32, #tpu.memory_space<vmem>>, vector<8x1xf32>
    tpu.vector_store %arg9[%c0_26, %c0_27], %43 {strides = array<i32>} : memref<8x1xf32, #tpu.memory_space<vmem>>, vector<8x1xf32>,
    %c0_i32_28 = arith.constant 0 : i32
    %45 = arith.cmpi eq, %arg1, %c0_i32_28 : i32
    %46 = arith.extui %45 : i1 to i32
    %c0_i32_29 = arith.constant 0 : i32
    %47 = arith.cmpi ne, %46, %c0_i32_29 : i32
    scf.if %47 {
      %c0_30 = arith.constant 0 : index
      %c0_31 = arith.constant 0 : index
      %48 = vector.load %arg7[%c0_30, %c0_31] : memref<8x1xf32, #tpu.memory_space<vmem>>, vector<8x1xf32>
      %c0_32 = arith.constant 0 : index
      %c0_33 = arith.constant 0 : index
      %49 = vector.load %arg9[%c0_32, %c0_33] : memref<8x1xf32, #tpu.memory_space<vmem>>, vector<8x1xf32>
      %50 = arith.divf %48, %49 : vector<8x1xf32>
      %c0_34 = arith.constant 0 : index
      %c0_35 = arith.constant 0 : index
      %51 = vector.load %arg8[%c0_34, %c0_35] : memref<8x1xf32, #tpu.memory_space<vmem>>, vector<8x1xf32>
      %52 = math.log %51 : vector<8x1xf32>
      %53 = arith.subf %50, %52 : vector<8x1xf32>
      %cst_36 = arith.constant 0.000000e+00 : f32
      %54 = vector.broadcast %cst_36 : f32 to vector<8x1xf32>
      %55 = arith.subf %54, %53 : vector<8x1xf32>
      %c0_37 = arith.constant 0 : index
      %c0_38 = arith.constant 0 : index
      %56 = vector.load %arg6[%c0_37, %c0_38] : memref<8x1xf32, #tpu.memory_space<vmem>>, vector<8x1xf32>
      tpu.vector_store %arg6[%c0_37, %c0_38], %55 {strides = array<i32>} : memref<8x1xf32, #tpu.memory_space<vmem>>, vector<8x1xf32>,
    } else {
    }
    return
  }
  func.func @transform_0(%arg0: i32, %arg1: i32) -> (i32, i32) {
    %c0_i32 = arith.constant 0 : i32
    %c0_i32_0 = arith.constant 0 : i32
    return %arg0, %c0_i32 : i32, i32
  }
  func.func @transform_1(%arg0: i32, %arg1: i32) -> (i32, i32) {
    %c0_i32 = arith.constant 0 : i32
    %c0_i32_0 = arith.constant 0 : i32
    return %arg1, %c0_i32 : i32, i32
  }
  func.func @transform_2(%arg0: i32, %arg1: i32) -> (i32, i32) {
    %c0_i32 = arith.constant 0 : i32
    return %arg0, %arg1 : i32, i32
  }
  func.func @transform_3(%arg0: i32, %arg1: i32) -> (i32, i32) {
    %c0_i32 = arith.constant 0 : i32
    return %arg0, %arg1 : i32, i32
  }
  func.func @transform_4(%arg0: i32, %arg1: i32) -> (i32, i32) {
    %c0_i32 = arith.constant 0 : i32
    %c0_i32_0 = arith.constant 0 : i32
    return %arg0, %c0_i32 : i32, i32
  }
}

</mosaic_0001>

<llo_original>
// kernel: tpu_custom_call.1
$region0: #{tpu_custom_call.1}
  #allocation0 [shape = 'u32[]', space=smem, size = 0x4, offset = 0x4, fixed_abs, tag = 'smem constant byte address 0x4 - core index']
  #allocation1 [shape = 'u32[144,128]{1,0:T(1,128)}', space=vmem, size = 0x12000, scoped, tag = 'internal scratch']
  #allocation2 [shape = 'f32[8,1]{1,0:T(8,128)}', space=vmem, size = 0x1000, scoped, tag = 'scratch operand']
  #allocation3 [shape = 'f32[8,1]{1,0:T(8,128)}', space=vmem, size = 0x1000, scoped, tag = 'scratch operand']
  #allocation4 [shape = 'f32[8,1]{1,0:T(8,128)}', space=vmem, size = 0x1000, scoped, tag = 'scratch operand']
  %s0 = inlined_call_operand.vmem [shape: f32[8,32], index: 0, kind: input, shape index: {}]
  %s1 = inlined_call_operand.vmem [shape: f32[128,32], index: 1, kind: input, shape index: {}]
  %s2 = inlined_call_operand.vmem [shape: f32[8,128], index: 2, kind: input, shape index: {}]
  %s3 = inlined_call_operand.vmem [shape: f32[8,128], index: 3, kind: input, shape index: {}]
  %s4 = inlined_call_operand.vmem [shape: f32[8,1], index: 4, kind: output, shape index: {}]
  %s5 = sld [smem:[#allocation0]]
  $region34: #{tpu_custom_call.1} parent=0
    _
  %s7 = ssub.s32 1, %s5
  %s8 = scalar_select 0, %s7, %s5
  // Predicated region
  $region2: #{tpu_custom_call.1} parent=0 // pred_check
    _
  $region3: #{tpu_custom_call.1} parent=0 // pred_check_branch
    %10 = sbr.rel (0) target = $region5
  $region4: #{tpu_custom_call.1} parent=0 // pred_region
    _
  $region5: #{tpu_custom_call.1} parent=0 // pred_fallthru
    _
  // Predicated region
  $region6: #{tpu_custom_call.1} parent=0 // pred_check
    _
  $region7: #{tpu_custom_call.1} parent=0 // pred_check_branch
    %12 = sbr.rel (0) target = $region9
  $region8: #{tpu_custom_call.1} parent=0 // pred_region
    _
  $region9: #{tpu_custom_call.1} parent=0 // pred_fallthru
    _
  // Predicated region
  $region10: #{tpu_custom_call.1} parent=0 // pred_check
    _
  $region11: #{tpu_custom_call.1} parent=0 // pred_check_branch
    %14 = sbr.rel (0) target = $region13
  $region12: #{tpu_custom_call.1} parent=0 // pred_region
    _
  $region13: #{tpu_custom_call.1} parent=0 // pred_fallthru
    _
  // Predicated region
  $region14: #{tpu_custom_call.1} parent=0 // pred_check
    _
  $region15: #{tpu_custom_call.1} parent=0 // pred_check_branch
    %16 = sbr.rel (0) target = $region17
  $region16: #{tpu_custom_call.1} parent=0 // pred_region
    _
  $region17: #{tpu_custom_call.1} parent=0 // pred_fallthru
    _
  %p17 = scmp.eq.s32.totalorder 0, 0
  // Predicated region
  $region18: #{tpu_custom_call.1} parent=0 // pred_check
    %p18 = pneg %p17
  $region19: #{tpu_custom_call.1} parent=0 // pred_check_branch
    %20 = sbr.rel (%p18) target = $region21
  $region20: #{tpu_custom_call.1} parent=0 // pred_region
    %vm21 = vcmask 7168
    %22 = vst.msk [vmem:[#allocation2] sm:$0xff] %vm21, 0.0
    %23 = vst.msk [vmem:[#allocation3] sm:$0xff] %vm21, 0.0
    %24 = vst.msk [vmem:[#allocation4] sm:$0xff] %vm21, 0.0
  $region21: #{tpu_custom_call.1} parent=0 // pred_fallthru
    _
  %v25 = vld [vmem:[%s0] sm:$0xff]
  %v26 = vld [vmem:[%s1] sm:$0xff]
  %v27 = vld [vmem:[%s1 + $0x8] sm:$0xff]
  %v28 = vld [vmem:[%s1 + $0x10] sm:$0xff]
  %v29 = vld [vmem:[%s1 + $0x18] sm:$0xff]
  %v30 = vld [vmem:[%s1 + $0x20] sm:$0xff]
  %v31 = vld [vmem:[%s1 + $0x28] sm:$0xff]
  %v32 = vld [vmem:[%s1 + $0x30] sm:$0xff]
  %v33 = vld [vmem:[%s1 + $0x38] sm:$0xff]
  %v34 = vld [vmem:[%s1 + $0x40] sm:$0xff]
  %v35 = vld [vmem:[%s1 + $0x48] sm:$0xff]
  %v36 = vld [vmem:[%s1 + $0x50] sm:$0xff]
  %v37 = vld [vmem:[%s1 + $0x58] sm:$0xff]
  %v38 = vld [vmem:[%s1 + $0x60] sm:$0xff]
  %v39 = vld [vmem:[%s1 + $0x68] sm:$0xff]
  %v40 = vld [vmem:[%s1 + $0x70] sm:$0xff]
  %v41 = vld [vmem:[%s1 + $0x78] sm:$0xff]
  %v42 = vmul.f32 %v25, %v25
  %vm43 = vcmask 261120
  %v44 = vsel %vm43, %v42, 0.0
  %45 = vadd.xlane.f32.xlu0 %v44
  %v46 = vpop.xlane.xlu0 %45
  %v47 = vmax.f32 %v46, 1e-24
  %v48 = vrsqrt.pop %v47
  %v49 = vmul.f32 %v26, %v26
  %v50 = vmul.f32 %v27, %v27
  %v51 = vmul.f32 %v28, %v28
  %v52 = vmul.f32 %v29, %v29
  %v53 = vmul.f32 %v30, %v30
  %v54 = vmul.f32 %v31, %v31
  %v55 = vmul.f32 %v32, %v32
  %v56 = vmul.f32 %v33, %v33
  %v57 = vmul.f32 %v34, %v34
  %v58 = vmul.f32 %v35, %v35
  %v59 = vmul.f32 %v36, %v36
  %v60 = vmul.f32 %v37, %v37
  %v61 = vmul.f32 %v38, %v38
  %v62 = vmul.f32 %v39, %v39
  %v63 = vmul.f32 %v40, %v40
  %v64 = vmul.f32 %v41, %v41
  %v65 = vsel %vm43, %v49, 0.0
  %66 = vadd.xlane.f32.xlu0 %v65
  %v67 = vpop.xlane.xlu0 %66
  %v68 = vsel %vm43, %v50, 0.0
  %69 = vadd.xlane.f32.xlu0 %v68
  %v70 = vpop.xlane.xlu0 %69
  %v71 = vsel %vm43, %v51, 0.0
  %72 = vadd.xlane.f32.xlu0 %v71
  %v73 = vpop.xlane.xlu0 %72
  %v74 = vsel %vm43, %v52, 0.0
  %75 = vadd.xlane.f32.xlu0 %v74
  %v76 = vpop.xlane.xlu0 %75
  %v77 = vsel %vm43, %v53, 0.0
  %78 = vadd.xlane.f32.xlu0 %v77
  %v79 = vpop.xlane.xlu0 %78
  %v80 = vsel %vm43, %v54, 0.0
  %81 = vadd.xlane.f32.xlu0 %v80
  %v82 = vpop.xlane.xlu0 %81
  %v83 = vsel %vm43, %v55, 0.0
  %84 = vadd.xlane.f32.xlu0 %v83
  %v85 = vpop.xlane.xlu0 %84
  %v86 = vsel %vm43, %v56, 0.0
  %87 = vadd.xlane.f32.xlu0 %v86
  %v88 = vpop.xlane.xlu0 %87
  %v89 = vsel %vm43, %v57, 0.0
  %90 = vadd.xlane.f32.xlu0 %v89
  %v91 = vpop.xlane.xlu0 %90
  %v92 = vsel %vm43, %v58, 0.0
  %93 = vadd.xlane.f32.xlu0 %v92
  %v94 = vpop.xlane.xlu0 %93
  %v95 = vsel %vm43, %v59, 0.0
  %96 = vadd.xlane.f32.xlu0 %v95
  %v97 = vpop.xlane.xlu0 %96
  %v98 = vsel %vm43, %v60, 0.0
  %99 = vadd.xlane.f32.xlu0 %v98
  %v100 = vpop.xlane.xlu0 %99
  %v101 = vsel %vm43, %v61, 0.0
  %102 = vadd.xlane.f32.xlu0 %v101
  %v103 = vpop.xlane.xlu0 %102
  %v104 = vsel %vm43, %v62, 0.0
  %105 = vadd.xlane.f32.xlu0 %v104
  %v106 = vpop.xlane.xlu0 %105
  %v107 = vsel %vm43, %v63, 0.0
  %108 = vadd.xlane.f32.xlu0 %v107
  %v109 = vpop.xlane.xlu0 %108
  %v110 = vsel %vm43, %v64, 0.0
  %111 = vadd.xlane.f32.xlu0 %v110
  %v112 = vpop.xlane.xlu0 %111
  %v113 = vmax.f32 %v67, 1e-24
  %v114 = vmax.f32 %v70, 1e-24
  %v115 = vmax.f32 %v73, 1e-24
  %v116 = vmax.f32 %v76, 1e-24
  %v117 = vmax.f32 %v79, 1e-24
  %v118 = vmax.f32 %v82, 1e-24
  %v119 = vmax.f32 %v85, 1e-24
  %v120 = vmax.f32 %v88, 1e-24
  %v121 = vmax.f32 %v91, 1e-24
  %v122 = vmax.f32 %v94, 1e-24
  %v123 = vmax.f32 %v97, 1e-24
  %v124 = vmax.f32 %v100, 1e-24
  %v125 = vmax.f32 %v103, 1e-24
  %v126 = vmax.f32 %v106, 1e-24
  %v127 = vmax.f32 %v109, 1e-24
  %v128 = vmax.f32 %v112, 1e-24
  %v129 = vrsqrt.pop %v113
  %v130 = vrsqrt.pop %v114
  %v131 = vrsqrt.pop %v115
  %v132 = vrsqrt.pop %v116
  %v133 = vrsqrt.pop %v117
  %v134 = vrsqrt.pop %v118
  %v135 = vrsqrt.pop %v119
  %v136 = vrsqrt.pop %v120
  %v137 = vrsqrt.pop %v121
  %v138 = vrsqrt.pop %v122
  %v139 = vrsqrt.pop %v123
  %v140 = vrsqrt.pop %v124
  %v141 = vrsqrt.pop %v125
  %v142 = vrsqrt.pop %v126
  %v143 = vrsqrt.pop %v127
  %v144 = vrsqrt.pop %v128
  %v145 = vmul.f32 %v48, 2.0
  %v146 = vmul.f32 %v25, %v145
  %v147 = vmul.f32 %v26, %v129
  %v148 = vmul.f32 %v27, %v130
  %v149 = vmul.f32 %v28, %v131
  %v150 = vmul.f32 %v29, %v132
  %v151 = vmul.f32 %v30, %v133
  %v152 = vmul.f32 %v31, %v134
  %v153 = vmul.f32 %v32, %v135
  %v154 = vmul.f32 %v33, %v136
  %v155 = vmul.f32 %v34, %v137
  %v156 = vmul.f32 %v35, %v138
  %v157 = vmul.f32 %v36, %v139
  %v158 = vmul.f32 %v37, %v140
  %v159 = vmul.f32 %v38, %v141
  %v160 = vmul.f32 %v39, %v142
  %v161 = vmul.f32 %v40, %v143
  %v162 = vmul.f32 %v41, %v144
  %v164 = vsel %vm43, %v146, 0
  %v167 = vsel %vm43, %v147, 0
  %v170 = vsel %vm43, %v148, 0
  %v173 = vsel %vm43, %v149, 0
  %v176 = vsel %vm43, %v150, 0
  %v179 = vsel %vm43, %v151, 0
  %v182 = vsel %vm43, %v152, 0
  %v185 = vsel %vm43, %v153, 0
  %v188 = vsel %vm43, %v154, 0
  %v191 = vsel %vm43, %v155, 0
  %v194 = vsel %vm43, %v156, 0
  %v197 = vsel %vm43, %v157, 0
  %v200 = vsel %vm43, %v158, 0
  %v203 = vsel %vm43, %v159, 0
  %v206 = vsel %vm43, %v160, 0
  %v209 = vsel %vm43, %v161, 0
  %v212 = vsel %vm43, %v162, 0
  %214 = vmatprep.subr.mxu0 0.0
  %215 = vmatpush1.xpose.msra.mxu0 %v167
  %216 = vmatprep.subr.mxu0 0.0
  %217 = vmatpush1.xpose.msra.mxu0 %v170
  %218 = vmatprep.subr.mxu0 0.0
  %219 = vmatpush1.xpose.msra.mxu0 %v173
  %220 = vmatprep.subr.mxu0 0.0
  %221 = vmatpush1.xpose.msra.mxu0 %v176
  %222 = vmatprep.subr.mxu0 0.0
  %223 = vmatpush1.xpose.msra.mxu0 %v179
  %224 = vmatprep.subr.mxu0 0.0
  %225 = vmatpush1.xpose.msra.mxu0 %v182
  %226 = vmatprep.subr.mxu0 0.0
  %227 = vmatpush1.xpose.msra.mxu0 %v185
  %228 = vmatprep.subr.mxu0 0.0
  %229 = vmatpush1.xpose.msra.mxu0 %v188
  %230 = vmatprep.subr.mxu0 0.0
  %231 = vmatpush1.xpose.msra.mxu0 %v191
  %232 = vmatprep.subr.mxu0 0.0
  %233 = vmatpush1.xpose.msra.mxu0 %v194
  %234 = vmatprep.subr.mxu0 0.0
  %235 = vmatpush1.xpose.msra.mxu0 %v197
  %236 = vmatprep.subr.mxu0 0.0
  %237 = vmatpush1.xpose.msra.mxu0 %v200
  %238 = vmatprep.subr.mxu0 0.0
  %239 = vmatpush1.xpose.msra.mxu0 %v203
  %240 = vmatprep.subr.mxu0 0.0
  %241 = vmatpush1.xpose.msra.mxu0 %v206
  %242 = vmatprep.subr.mxu0 0.0
  %243 = vmatpush1.xpose.msra.mxu0 %v209
  %244 = vmatprep.subr.mxu0 0.0
  %245 = vmatpush1.xpose.msra.mxu0 %v212
  %246 = vmatprep.subr.mxu0 0.0
  %247 = vmatpush1.xpose.msra.mxu0 0.0
  %248 = vmatprep.subr.mxu0 0.0
  %249 = vmatpush1.xpose.msra.mxu0 0.0
  %250 = vmatprep.subr.mxu0 0.0
  %251 = vmatpush1.xpose.msra.mxu0 0.0
  %252 = vmatprep.subr.mxu0 0.0
  %253 = vmatpush1.xpose.msra.mxu0 0.0
  %254 = vmatprep.subr.mxu0 0.0
  %255 = vmatpush1.xpose.msra.mxu0 0.0
  %256 = vmatprep.subr.mxu0 0.0
  %257 = vmatpush1.xpose.msra.mxu0 0.0
  %258 = vmatprep.subr.mxu0 0.0
  %259 = vmatpush1.xpose.msra.mxu0 0.0
  %260 = vmatprep.subr.mxu0 0.0
  %261 = vmatpush1.xpose.msra.mxu0 0.0
  %262 = vmatprep.subr.mxu0 0.0
  %263 = vmatpush1.xpose.msra.mxu0 0.0
  %264 = vmatprep.subr.mxu0 0.0
  %265 = vmatpush1.xpose.msra.mxu0 0.0
  %266 = vmatprep.subr.mxu0 0.0
  %267 = vmatpush1.xpose.msra.mxu0 0.0
  %268 = vmatprep.subr.mxu0 0.0
  %269 = vmatpush1.xpose.msra.mxu0 0.0
  %270 = vmatprep.subr.mxu0 0.0
  %271 = vmatpush1.xpose.msra.mxu0 0.0
  %272 = vmatprep.subr.mxu0 0.0
  %273 = vmatpush1.xpose.msra.mxu0 0.0
  %274 = vmatprep.subr.mxu0 0.0
  %275 = vmatpush1.xpose.msra.mxu0 0.0
  %276 = vmatprep.subr.mxu0 0.0
  %277 = vmatpush1.xpose.msra.mxu0 0.0
  %278 = vmatprep.mubr.f32.mxu0 0.0
  %279 = vmatmul.mubr.f32.gmra.mrb[0].mxu0 %v164
  %v280 = vpop.f32.mrb[0].mxu0
  %v281 = vadd.f32 0.0, %v280
  %v282 = vpop.f32.mrb[0].mxu0
  %283 = vdwg.mxu0
  %v284 = vld [vmem:[%s2] sm:$0xff]
  %v285 = vld [vmem:[%s3] sm:$0xff]
  %v286 = vld [vmem:[#allocation3] sm:$0xff]
  %v287 = vmul.f32 %v281, 1.442695
  %v288 = vpow.pop %v287
  %v289 = vadd.f32 %v284, %v285
  %v290 = vmul.f32 %v288, %v289
  %291 = vadd.xlane.f32.xlu0 %v290
  %v292 = vpop.xlane.xlu0 %291
  %v293 = vadd.f32 %v286, %v292
  %vm294 = vcmask 7168
  %295 = vst.msk [vmem:[#allocation3] sm:$0xff] %vm294, %v293
  %v296 = vld [vmem:[#allocation2] sm:$0xff]
  %v297 = vmul.f32 %v281, %v284
  %298 = vadd.xlane.f32.xlu0 %v297
  %v299 = vpop.xlane.xlu0 %298
  %v300 = vadd.f32 %v296, %v299
  %301 = vst.msk [vmem:[#allocation2] sm:$0xff] %vm294, %v300
  %v302 = vld [vmem:[#allocation4] sm:$0xff]
  %303 = vadd.xlane.f32.xlu0 %v284
  %v304 = vpop.xlane.xlu0 %303
  %v305 = vadd.f32 %v302, %v304
  %306 = vst.msk [vmem:[#allocation4] sm:$0xff] %vm294, %v305
  // Predicated region
  $region22: #{tpu_custom_call.1} parent=0 // pred_check
    %p307 = pneg %p17
  $region23: #{tpu_custom_call.1} parent=0 // pred_check_branch
    %309 = sbr.rel (%p307) target = $region25
  $region24: #{tpu_custom_call.1} parent=0 // pred_region
    %v310 = vld [vmem:[#allocation2] sm:$0xff]
    %v311 = vld [vmem:[#allocation4] sm:$0xff]
    %v312 = vrcp.pop %v311
    %v313 = vmul.f32 %v310, %v312
    %v314 = vld [vmem:[#allocation3] sm:$0xff]
    %v315 = vlog2.pop %v314
    %v316 = vmul.f32 %v315, 0.6931472
    %v317 = vsub.f32 %v313, %v316
    %v318 = vsub.f32 0.0, %v317
    %319 = vst.msk [vmem:[%s4] sm:$0xff] %vm294, %v318
  $region25: #{tpu_custom_call.1} parent=0 // pred_fallthru
    _
  // Predicated region
  $region26: #{tpu_custom_call.1} parent=0 // pred_check
    _
  $region27: #{tpu_custom_call.1} parent=0 // pred_check_branch
    %321 = sbr.rel (0) target = $region29
  $region28: #{tpu_custom_call.1} parent=0 // pred_region
    _
  $region29: #{tpu_custom_call.1} parent=0 // pred_fallthru
    _
  // Predicated region
  $region30: #{tpu_custom_call.1} parent=0 // pred_check
    _
  $region31: #{tpu_custom_call.1} parent=0 // pred_check_branch
    %323 = sbr.rel (0) target = $region33
  $region32: #{tpu_custom_call.1} parent=0 // pred_region
    _
  $region33: #{tpu_custom_call.1} parent=0 // pred_fallthru
    _

</llo_original>
